<compile_context>
chip_gen: v5e
topology: v5e:2x2
jax: 0.10.0
libtpu: 0.0.40
codegen_flags: <defaults>
</compile_context>

<pallas_src>
import math

import jax
import jax.numpy as jnp
from jax import lax
from jax.experimental import pallas as pl
from jax.experimental.pallas import tpu as pltpu


def _make_cdc_kernel(H, W, KH, KW, pad, margin):
    HW = H * W

    def kernel(x_ref, w_ref, b_ref, o_ref, buf_ref, patches_ref):
        # x_ref      : (1, Cin, H*W)          image, spatial flattened into lanes
        # w_ref      : (Cout, KH*KW*Cin)      CDC-folded, im2col-ordered weights
        # b_ref      : (Cout, 1)              CDC-folded bias
        # o_ref      : (1, Cout, H*W)         lane-dense output block
        # buf_ref    : (Cin, H*W + 2*margin)  zero-margined flat copy of the image
        # patches_ref: (KH*KW*Cin, H*W)       im2col patch matrix
        Cin = x_ref.shape[1]

        # Zero-margined flat image. Re-initialised every grid step so the kernel
        # stays correct when the "parallel" batch axis is split across TensorCores.
        buf_ref[...] = jnp.zeros(buf_ref.shape, buf_ref.dtype)
        buf_ref[:, margin:margin + HW] = x_ref[0]     # lane-tile-aligned store

        # Column index of every lane. Only horizontal taps need masking; vertical
        # out-of-range taps automatically read zeros from the margins.
        wcol = lax.broadcasted_iota(jnp.int32, (1, HW), 1) % W
        col_mask = {}
        for kw in range(KW):
            dw = kw - pad
            if dw < 0:
                col_mask[dw] = wcol + dw >= 0
            elif dw > 0:
                col_mask[dw] = wcol + dw <= W - 1

        # Build the im2col matrix once per step:
        #   patches[(kh*KW + kw)*Cin + ci, h*W + w] = x[ci, h+kh-pad, w+kw-pad]
        # with zero padding outside the image.
        for kh in range(KH):
            for kw in range(KW):
                dh, dw = kh - pad, kw - pad
                start = margin + dh * W + dw                      # static lane offset
                tap = buf_ref[:, start:start + HW]                # (Cin, H*W)
                if dw != 0:
                    tap = jnp.where(col_mask[dw], tap, 0.0)       # mask row-edge wrap
                r0 = (kh * KW + kw) * Cin
                patches_ref[r0:r0 + Cin, :] = tap

        # Single MXU matmul: (Cout, KH*KW*Cin) @ (KH*KW*Cin, H*W) -> (Cout, H*W).
        out = jnp.dot(w_ref[...], patches_ref[...],
                      preferred_element_type=jnp.float32)
        out = out + b_ref[...]                                    # broadcast over lanes
        o_ref[0] = out.astype(o_ref.dtype)

    return kernel


def conv2d_cd_pallas(x_nchw, weight_oihw, bias, theta=0.7):
    """x_nchw: (N, Cin, H, W); weight_oihw: (Cout, Cin, KH, KW); bias: (Cout,)."""
    N, Cin, H, W = x_nchw.shape
    Cout, _, KH, KW = weight_oihw.shape
    # Module is only shape-consistent for stride=1, dilation=1, padding=K//2, odd K.
    pad = KH // 2
    HW = H * W
    theta = float(theta)

    # ---- fold the central-difference term into the conv parameters (exact) ----
    #   out = conv(x, W, pad) + b - theta*(conv1x1(x, W.sum) + b)
    #       = conv(x, W', pad) + (1 - theta)*b,
    #   W' = W with the center tap reduced by theta * W.sum(kh, kw).
    w_sum = jnp.sum(weight_oihw, axis=(2, 3))                       # (Cout, Cin)
    w_folded = weight_oihw.at[:, :, KH // 2, KW // 2].add(-theta * w_sum)
    b_folded = (1.0 - theta) * bias

    # im2col-ordered weight matrix: column index = (kh*KW + kw)*Cin + ci.
    w_mat = jnp.transpose(w_folded, (0, 2, 3, 1)).reshape(Cout, KH * KW * Cin)
    b_col = b_folded.reshape(Cout, 1)

    # Free, contiguous reshape (no transpose, no HBM pad): spatial -> lane axis.
    x_flat = x_nchw.reshape(N, Cin, HW)

    # Zero margin around the flat image; rounded up to a lane tile so the
    # in-kernel interior store stays aligned.
    margin = ((pad * (W + 1) + 127) // 128) * 128

    kernel = _make_cdc_kernel(H, W, KH, KW, pad, margin)

    out_flat = pl.pallas_call(
        kernel,
        out_shape=jax.ShapeDtypeStruct((N, Cout, HW), x_nchw.dtype),
        grid_spec=pltpu.PrefetchScalarGridSpec(
            num_scalar_prefetch=0,
            grid=(N,),                      # >=2 parallel steps at N>=2 (v7x megacore)
            in_specs=[
                pl.BlockSpec((1, Cin, HW), lambda n: (n, 0, 0)),
                pl.BlockSpec((Cout, KH * KW * Cin), lambda n: (0, 0)),
                pl.BlockSpec((Cout, 1), lambda n: (0, 0)),
            ],
            out_specs=pl.BlockSpec((1, Cout, HW), lambda n: (n, 0, 0)),
            scratch_shapes=[
                pltpu.VMEM((Cin, HW + 2 * margin), x_nchw.dtype),
                pltpu.VMEM((KH * KW * Cin, HW), x_nchw.dtype),
            ],
        ),
        compiler_params=pltpu.CompilerParams(
            dimension_semantics=("parallel",),
            vmem_limit_bytes=32 * 1024 * 1024,   # tiny blocks; explicit, v7x-safe
        ),
    )(x_flat, w_mat, b_col)

    # Free reshape back to NCHW (the kernel already emits channels-major).
    return out_flat.reshape(N, Cout, H, W)


def conv2d_cd_reference(x_nchw, weight_oihw, bias, theta=0.7):
    """Pure-JAX reference mirroring the PyTorch module exactly."""
    dn = ("NCHW", "OIHW", "NCHW")
    out_normal = lax.conv_general_dilated(
        x_nchw, weight_oihw, window_strides=(1, 1),
        padding=((1, 1), (1, 1)), dimension_numbers=dn)
    out_normal = out_normal + bias[None, :, None, None]
    if math.fabs(theta - 0.0) < 1e-8:
        return out_normal
    kernel_diff = weight_oihw.sum(axis=(2, 3))[:, :, None, None]
    out_diff = lax.conv_general_dilated(
        x_nchw, kernel_diff, window_strides=(1, 1),
        padding=((0, 0), (0, 0)), dimension_numbers=dn)
    out_diff = out_diff + bias[None, :, None, None]
    return out_normal - theta * out_diff


if __name__ == "__main__":
    # Module config: Conv2d_cd(in_channels=4, out_channels=8, kernel_size=3,
    #                          stride=1, padding=1, bias=True, theta=0.7)
    N, Cin, Cout, H, W, K = 2, 4, 8, 16, 16, 3
    theta = 0.7

    key = jax.random.PRNGKey(0)
    kx, kw, kb = jax.random.split(key, 3)
    x = jax.random.normal(kx, (N, Cin, H, W), dtype=jnp.float32)
    # Deterministic synthetic parameters (same shapes as nn.Conv2d(4, 8, 3)).
    fan_in = Cin * K * K
    bound = 1.0 / math.sqrt(fan_in)
    weight = jax.random.uniform(kw, (Cout, Cin, K, K), dtype=jnp.float32,
                                minval=-bound, maxval=bound)
    bias = jax.random.uniform(kb, (Cout,), dtype=jnp.float32,
                              minval=-bound, maxval=bound)

    out = conv2d_cd_pallas(x, weight, bias, theta)
    out = jax.block_until_ready(out)

    ref = conv2d_cd_reference(x, weight, bias, theta)
    assert out.shape == (N, Cout, H, W)
    assert jnp.max(jnp.abs(out - ref)) < 1e-4

    print("KERNEL_OK")
</pallas_src>

<mosaic_0001>
module attributes {stable_mosaic.version = 11 : i64} {
  func.func @kernel(%arg0: i32, %arg1: memref<1x4x256xf32, #tpu.memory_space<vmem>>, %arg2: memref<8x36xf32, #tpu.memory_space<vmem>>, %arg3: memref<8x1xf32, #tpu.memory_space<vmem>>, %arg4: memref<1x8x256xf32, #tpu.memory_space<vmem>>, %arg5: memref<4x512xf32, #tpu.memory_space<vmem>>, %arg6: memref<36x256xf32, #tpu.memory_space<vmem>>) attributes {dimension_semantics = [#tpu.dimension_semantics<parallel>], iteration_bounds = array<i64: 2>, scalar_prefetch = 0 : i64, scratch_operands = 2 : i64, tpu.core_type = #tpu.core_type<tc>, window_params = [{transform_indices = @transform_0, window_bounds = array<i64: 1, 4, 256>}, {pipeline_mode = #tpu.pipeline_mode<synchronous>, transform_indices = @transform_1, window_bounds = array<i64: 8, 36>}, {pipeline_mode = #tpu.pipeline_mode<synchronous>, transform_indices = @transform_2, window_bounds = array<i64: 8, 1>}, {transform_indices = @transform_3, window_bounds = array<i64: 1, 8, 256>}]} {
    %cst = arith.constant 0.000000e+00 : f32
    %0 = vector.broadcast %cst : f32 to vector<4x512xf32>
    %c0 = arith.constant 0 : index
    %c0_0 = arith.constant 0 : index
    %1 = vector.load %arg5[%c0, %c0_0] : memref<4x512xf32, #tpu.memory_space<vmem>>, vector<4x512xf32>
    tpu.vector_store %arg5[%c0, %c0_0], %0 {strides = array<i32>} : memref<4x512xf32, #tpu.memory_space<vmem>>, vector<4x512xf32>,
    %c0_1 = arith.constant 0 : index
    %c0_2 = arith.constant 0 : index
    %c0_3 = arith.constant 0 : index
    %2 = vector.load %arg1[%c0_1, %c0_2, %c0_3] : memref<1x4x256xf32, #tpu.memory_space<vmem>>, vector<1x4x256xf32>
    %3 = vector.shape_cast %2 : vector<1x4x256xf32> to vector<4x256xf32>
    %c0_4 = arith.constant 0 : index
    %c128 = arith.constant 128 : index
    %4 = vector.load %arg5[%c0_4, %c128] : memref<4x512xf32, #tpu.memory_space<vmem>>, vector<4x256xf32>
    tpu.vector_store %arg5[%c0_4, %c128], %3 {strides = array<i32>} : memref<4x512xf32, #tpu.memory_space<vmem>>, vector<4x256xf32>,
    %5 = tpu.iota {dimensions = array<i32: 1>} : vector<1x256xi32>
    %c16_i32 = arith.constant 16 : i32
    %c0_i32 = arith.constant 0 : i32
    %6 = arith.cmpi eq, %c16_i32, %c0_i32 : i32
    %c1_i32 = arith.constant 1 : i32
    %7 = arith.select %6, %c1_i32, %c16_i32 : i32
    %8 = vector.broadcast %7 : i32 to vector<1x256xi32>
    %9 = arith.remsi %5, %8 : vector<1x256xi32>
    %c0_i32_5 = arith.constant 0 : i32
    %10 = vector.broadcast %c0_i32_5 : i32 to vector<1x256xi32>
    %11 = arith.cmpi ne, %9, %10 : vector<1x256xi32>
    %c0_i32_6 = arith.constant 0 : i32
    %12 = vector.broadcast %c0_i32_6 : i32 to vector<1x256xi32>
    %13 = arith.cmpi slt, %9, %12 : vector<1x256xi32>
    %c0_i32_7 = arith.constant 0 : i32
    %14 = arith.cmpi slt, %7, %c0_i32_7 : i32
    %15 = vector.broadcast %14 : i1 to vector<1x256xi1>
    %16 = vector.broadcast %15 : vector<1x256xi1> to vector<1x256xi1>
    %17 = arith.xori %13, %16 : vector<1x256xi1>
    %18 = arith.andi %17, %11 : vector<1x256xi1>
    %19 = vector.broadcast %7 : i32 to vector<1x256xi32>
    %20 = arith.addi %9, %19 : vector<1x256xi32>
    %21 = arith.select %18, %20, %9 : vector<1x256xi1>, vector<1x256xi32>
    %c-1_i32 = arith.constant -1 : i32
    %22 = vector.broadcast %c-1_i32 : i32 to vector<1x256xi32>
    %23 = arith.addi %21, %22 : vector<1x256xi32>
    %c0_i32_8 = arith.constant 0 : i32
    %24 = vector.broadcast %c0_i32_8 : i32 to vector<1x256xi32>
    %25 = arith.cmpi sge, %23, %24 : vector<1x256xi32>
    %c1_i32_9 = arith.constant 1 : i32
    %26 = vector.broadcast %c1_i32_9 : i32 to vector<1x256xi32>
    %27 = arith.addi %21, %26 : vector<1x256xi32>
    %c15_i32 = arith.constant 15 : i32
    %28 = vector.broadcast %c15_i32 : i32 to vector<1x256xi32>
    %29 = arith.cmpi sle, %27, %28 : vector<1x256xi32>
    %c0_10 = arith.constant 0 : index
    %c111 = arith.constant 111 : index
    %30 = vector.load %arg5[%c0_10, %c111] : memref<4x512xf32, #tpu.memory_space<vmem>>, vector<4x256xf32>
    %cst_11 = arith.constant 0.000000e+00 : f32
    %31 = vector.shape_cast %25 : vector<1x256xi1> to vector<1x256xi1>
    %32 = vector.broadcast %31 : vector<1x256xi1> to vector<4x256xi1>
    %33 = vector.broadcast %cst_11 : f32 to vector<4x256xf32>
    %34 = arith.select %32, %30, %33 : vector<4x256xi1>, vector<4x256xf32>
    %c0_12 = arith.constant 0 : index
    %c0_13 = arith.constant 0 : index
    %35 = vector.load %arg6[%c0_12, %c0_13] : memref<36x256xf32, #tpu.memory_space<vmem>>, vector<4x256xf32>
    tpu.vector_store %arg6[%c0_12, %c0_13], %34 {strides = array<i32>} : memref<36x256xf32, #tpu.memory_space<vmem>>, vector<4x256xf32>,
    %c0_14 = arith.constant 0 : index
    %c112 = arith.constant 112 : index
    %36 = vector.load %arg5[%c0_14, %c112] : memref<4x512xf32, #tpu.memory_space<vmem>>, vector<4x256xf32>
    %c4 = arith.constant 4 : index
    %c0_15 = arith.constant 0 : index
    %37 = vector.load %arg6[%c4, %c0_15] : memref<36x256xf32, #tpu.memory_space<vmem>>, vector<4x256xf32>
    tpu.vector_store %arg6[%c4, %c0_15], %36 {strides = array<i32>} : memref<36x256xf32, #tpu.memory_space<vmem>>, vector<4x256xf32>,
    %c0_16 = arith.constant 0 : index
    %c113 = arith.constant 113 : index
    %38 = vector.load %arg5[%c0_16, %c113] : memref<4x512xf32, #tpu.memory_space<vmem>>, vector<4x256xf32>
    %cst_17 = arith.constant 0.000000e+00 : f32
    %39 = vector.shape_cast %29 : vector<1x256xi1> to vector<1x256xi1>
    %40 = vector.broadcast %39 : vector<1x256xi1> to vector<4x256xi1>
    %41 = vector.broadcast %cst_17 : f32 to vector<4x256xf32>
    %42 = arith.select %40, %38, %41 : vector<4x256xi1>, vector<4x256xf32>
    %c8 = arith.constant 8 : index
    %c0_18 = arith.constant 0 : index
    %43 = vector.load %arg6[%c8, %c0_18] : memref<36x256xf32, #tpu.memory_space<vmem>>, vector<4x256xf32>
    tpu.vector_store %arg6[%c8, %c0_18], %42 {strides = array<i32>} : memref<36x256xf32, #tpu.memory_space<vmem>>, vector<4x256xf32>,
    %c0_19 = arith.constant 0 : index
    %c127 = arith.constant 127 : index
    %44 = vector.load %arg5[%c0_19, %c127] : memref<4x512xf32, #tpu.memory_space<vmem>>, vector<4x256xf32>
    %cst_20 = arith.constant 0.000000e+00 : f32
    %45 = vector.shape_cast %25 : vector<1x256xi1> to vector<1x256xi1>
    %46 = vector.broadcast %45 : vector<1x256xi1> to vector<4x256xi1>
    %47 = vector.broadcast %cst_20 : f32 to vector<4x256xf32>
    %48 = arith.select %46, %44, %47 : vector<4x256xi1>, vector<4x256xf32>
    %c12 = arith.constant 12 : index
    %c0_21 = arith.constant 0 : index
    %49 = vector.load %arg6[%c12, %c0_21] : memref<36x256xf32, #tpu.memory_space<vmem>>, vector<4x256xf32>
    tpu.vector_store %arg6[%c12, %c0_21], %48 {strides = array<i32>} : memref<36x256xf32, #tpu.memory_space<vmem>>, vector<4x256xf32>,
    %c0_22 = arith.constant 0 : index
    %c128_23 = arith.constant 128 : index
    %50 = vector.load %arg5[%c0_22, %c128_23] : memref<4x512xf32, #tpu.memory_space<vmem>>, vector<4x256xf32>
    %c16 = arith.constant 16 : index
    %c0_24 = arith.constant 0 : index
    %51 = vector.load %arg6[%c16, %c0_24] : memref<36x256xf32, #tpu.memory_space<vmem>>, vector<4x256xf32>
    tpu.vector_store %arg6[%c16, %c0_24], %50 {strides = array<i32>} : memref<36x256xf32, #tpu.memory_space<vmem>>, vector<4x256xf32>,
    %c0_25 = arith.constant 0 : index
    %c129 = arith.constant 129 : index
    %52 = vector.load %arg5[%c0_25, %c129] : memref<4x512xf32, #tpu.memory_space<vmem>>, vector<4x256xf32>
    %cst_26 = arith.constant 0.000000e+00 : f32
    %53 = vector.shape_cast %29 : vector<1x256xi1> to vector<1x256xi1>
    %54 = vector.broadcast %53 : vector<1x256xi1> to vector<4x256xi1>
    %55 = vector.broadcast %cst_26 : f32 to vector<4x256xf32>
    %56 = arith.select %54, %52, %55 : vector<4x256xi1>, vector<4x256xf32>
    %c20 = arith.constant 20 : index
    %c0_27 = arith.constant 0 : index
    %57 = vector.load %arg6[%c20, %c0_27] : memref<36x256xf32, #tpu.memory_space<vmem>>, vector<4x256xf32>
    tpu.vector_store %arg6[%c20, %c0_27], %56 {strides = array<i32>} : memref<36x256xf32, #tpu.memory_space<vmem>>, vector<4x256xf32>,
    %c0_28 = arith.constant 0 : index
    %c143 = arith.constant 143 : index
    %58 = vector.load %arg5[%c0_28, %c143] : memref<4x512xf32, #tpu.memory_space<vmem>>, vector<4x256xf32>
    %cst_29 = arith.constant 0.000000e+00 : f32
    %59 = vector.shape_cast %25 : vector<1x256xi1> to vector<1x256xi1>
    %60 = vector.broadcast %59 : vector<1x256xi1> to vector<4x256xi1>
    %61 = vector.broadcast %cst_29 : f32 to vector<4x256xf32>
    %62 = arith.select %60, %58, %61 : vector<4x256xi1>, vector<4x256xf32>
    %c24 = arith.constant 24 : index
    %c0_30 = arith.constant 0 : index
    %63 = vector.load %arg6[%c24, %c0_30] : memref<36x256xf32, #tpu.memory_space<vmem>>, vector<4x256xf32>
    tpu.vector_store %arg6[%c24, %c0_30], %62 {strides = array<i32>} : memref<36x256xf32, #tpu.memory_space<vmem>>, vector<4x256xf32>,
    %c0_31 = arith.constant 0 : index
    %c144 = arith.constant 144 : index
    %64 = vector.load %arg5[%c0_31, %c144] : memref<4x512xf32, #tpu.memory_space<vmem>>, vector<4x256xf32>
    %c28 = arith.constant 28 : index
    %c0_32 = arith.constant 0 : index
    %65 = vector.load %arg6[%c28, %c0_32] : memref<36x256xf32, #tpu.memory_space<vmem>>, vector<4x256xf32>
    tpu.vector_store %arg6[%c28, %c0_32], %64 {strides = array<i32>} : memref<36x256xf32, #tpu.memory_space<vmem>>, vector<4x256xf32>,
    %c0_33 = arith.constant 0 : index
    %c145 = arith.constant 145 : index
    %66 = vector.load %arg5[%c0_33, %c145] : memref<4x512xf32, #tpu.memory_space<vmem>>, vector<4x256xf32>
    %cst_34 = arith.constant 0.000000e+00 : f32
    %67 = vector.shape_cast %29 : vector<1x256xi1> to vector<1x256xi1>
    %68 = vector.broadcast %67 : vector<1x256xi1> to vector<4x256xi1>
    %69 = vector.broadcast %cst_34 : f32 to vector<4x256xf32>
    %70 = arith.select %68, %66, %69 : vector<4x256xi1>, vector<4x256xf32>
    %c32 = arith.constant 32 : index
    %c0_35 = arith.constant 0 : index
    %71 = vector.load %arg6[%c32, %c0_35] : memref<36x256xf32, #tpu.memory_space<vmem>>, vector<4x256xf32>
    tpu.vector_store %arg6[%c32, %c0_35], %70 {strides = array<i32>} : memref<36x256xf32, #tpu.memory_space<vmem>>, vector<4x256xf32>,
    %c0_36 = arith.constant 0 : index
    %c0_37 = arith.constant 0 : index
    %72 = vector.load %arg2[%c0_36, %c0_37] : memref<8x36xf32, #tpu.memory_space<vmem>>, vector<8x36xf32>
    %c0_38 = arith.constant 0 : index
    %c0_39 = arith.constant 0 : index
    %73 = vector.load %arg6[%c0_38, %c0_39] : memref<36x256xf32, #tpu.memory_space<vmem>>, vector<36x256xf32>
    %cst_40 = arith.constant dense<0.000000e+00> : vector<8x256xf32>
    %74 = tpu.matmul %72, %73, %cst_40 {dimension_numbers = #tpu.dot_dimension_numbers<[1], [0], [0], [1], [0, 0, 1, 1], [], []>} : vector<8x36xf32>, vector<36x256xf32>, vector<8x256xf32> -> vector<8x256xf32>
    %c0_41 = arith.constant 0 : index
    %c0_42 = arith.constant 0 : index
    %75 = vector.load %arg3[%c0_41, %c0_42] : memref<8x1xf32, #tpu.memory_space<vmem>>, vector<8x1xf32>
    %76 = vector.broadcast %75 : vector<8x1xf32> to vector<8x256xf32>
    %77 = arith.addf %74, %76 : vector<8x256xf32>
    %c0_43 = arith.constant 0 : index
    %c0_44 = arith.constant 0 : index
    %c0_45 = arith.constant 0 : index
    %78 = vector.load %arg4[%c0_43, %c0_44, %c0_45] : memref<1x8x256xf32, #tpu.memory_space<vmem>>, vector<1x8x256xf32>
    %79 = vector.shape_cast %78 : vector<1x8x256xf32> to vector<8x256xf32>
    %80 = vector.shape_cast %77 : vector<8x256xf32> to vector<1x8x256xf32>
    tpu.vector_store %arg4[%c0_43, %c0_44, %c0_45], %80 {strides = array<i32>} : memref<1x8x256xf32, #tpu.memory_space<vmem>>, vector<1x8x256xf32>,
    return
  }
  func.func @transform_0(%arg0: i32) -> (i32, i32, i32) {
    %c0_i32 = arith.constant 0 : i32
    %c0_i32_0 = arith.constant 0 : i32
    %c0_i32_1 = arith.constant 0 : i32
    return %arg0, %c0_i32, %c0_i32_0 : i32, i32, i32
  }
  func.func @transform_1(%arg0: i32) -> (i32, i32) {
    %c0_i32 = arith.constant 0 : i32
    %c0_i32_0 = arith.constant 0 : i32
    %c0_i32_1 = arith.constant 0 : i32
    return %c0_i32, %c0_i32_0 : i32, i32
  }
  func.func @transform_2(%arg0: i32) -> (i32, i32) {
    %c0_i32 = arith.constant 0 : i32
    %c0_i32_0 = arith.constant 0 : i32
    %c0_i32_1 = arith.constant 0 : i32
    return %c0_i32, %c0_i32_0 : i32, i32
  }
  func.func @transform_3(%arg0: i32) -> (i32, i32, i32) {
    %c0_i32 = arith.constant 0 : i32
    %c0_i32_0 = arith.constant 0 : i32
    %c0_i32_1 = arith.constant 0 : i32
    return %arg0, %c0_i32, %c0_i32_0 : i32, i32, i32
  }
}

</mosaic_0001>

<llo_original>
// kernel: tpu_custom_call.1
$region0: #{tpu_custom_call.1}
  #allocation0 [shape = 'u32[]', space=smem, size = 0x4, offset = 0x4, fixed_abs, tag = 'smem constant byte address 0x4 - core index']
  #allocation1 [shape = 'u32[72,128]{1,0:T(1,128)}', space=vmem, size = 0x9000, scoped, tag = 'internal scratch']
  #allocation2 [shape = 'f32[4,512]{1,0:T(4,128)}', space=vmem, size = 0x2000, scoped, tag = 'scratch operand']
  #allocation3 [shape = 'f32[36,256]{1,0:T(8,128)}', space=vmem, size = 0xa000, scoped, tag = 'scratch operand']
  %s0 = inlined_call_operand.hbm [shape: f32[2,4,256], index: 0, kind: input, shape index: {}]
  %s1 = inlined_call_operand.vmem [shape: f32[8,36], index: 1, kind: input, shape index: {}]
  %s2 = inlined_call_operand.vmem [shape: f32[8,1], index: 2, kind: input, shape index: {}]
  %s3 = inlined_call_operand.hbm [shape: f32[2,8,256], index: 3, kind: output, shape index: {}]
  %s4 = sld [smem:[#allocation0]]
  $region49: #{tpu_custom_call.1} parent=0
    _
  %s6 = ssub.s32 1, %s4
  %s7 = scalar_select 0, %s6, %s4
  $region1: #{tpu_custom_call.1} parent=0
    #allocation4 [shape = 'u8[8192]{0}', space=vmem, size = 0x2000, scoped, tag = 'input window, operand 0']
    #allocation5 [shape = 's32[2]{0}', space=sflag, size = 0x8, scoped, tag = 'scoped memory for tpu_custom_call.1']
    #allocation6 [shape = 's32[2]{0}', space=sflag, size = 0x8, scoped, tag = 'scoped memory for tpu_custom_call.1']
    #allocation7 [shape = 'u8[16384]{0}', space=vmem, size = 0x4000, scoped, tag = 'output window, operand 0']
    %8 = vsyncpa [#allocation5], 0
    %s9 = scalar_lea.sflag [#allocation5], 1
    %10 = vsyncpa %s9, 0
    %11 = vsyncpa [#allocation6], 0
    %s12 = scalar_lea.sflag [#allocation6], 1
    %13 = vsyncpa %s12, 0
    loop: start=0, step=1, limit=4
    $region2: #{tpu_custom_call.1} parent=1 // loop_pre_header
      _
    $region3: #{tpu_custom_call.1} parent=1 // loop_header
      %s15 = sphi 0, %s19
      %p16 = scmp.ge.s32.totalorder %s15, 4
      %s25 = sphi 0, %s27
      %s28 = sphi 0, %s25
      %s29 = sphi 0, %s28
      %s45 = sphi 0, %s29
      %s49 = sphi 0, %s49
      %s51 = sphi 0, %s49
      %s52 = sphi 0, %s51
      %s66 = sphi 0, %s52
      %s70 = sphi 0, %s70
      %s72 = sphi 0, %s70
      %s73 = sphi 0, %s72
      %s87 = sphi 0, %s73
      %s93 = sphi 0, %s95
      %s96 = sphi 0, %s93
      %s97 = sphi 0, %s96
      %s113 = sphi 0, %s97
    $region4: #{tpu_custom_call.1} parent=1 // loop_header_branch
      %18 = sbr.rel (%p16) target = $region8
    $region5: #{tpu_custom_call.1} parent=1 // loop_body
      %s20 = ssub.s32 %s15, 1
      %s21 = ssub.s32 %s15, 2
      %s22 = sadd.s32 %s15, 1
      %s23 = ssub.s32 %s15, %s22
      %p24 = scmp.eq.s32.totalorder %s23, 0
      %s26 = sadd.s32 %s25, 1
      %s27 = scalar_select %p24, %s25, %s26
      %p30 = pneg %p24
      %p31 = scmp.eq.s32.totalorder %s15, 1
      %p32 = por %p30, %p31
      %p33 = scmp.ne.s32.totalorder %s25, %s28
      %p34 = scmp.eq.s32.totalorder %s15, 0
      %p35 = por %p33, %p34
      %p36 = scmp.ne.s32.totalorder %s25, %s28
      %p37 = scmp.eq.s32.totalorder %s20, 1
      %p38 = por %p36, %p37
      %p39 = scmp.ne.s32.totalorder %s28, %s29
      %p40 = scmp.eq.s32.totalorder %s20, 0
      %p41 = por %p39, %p40
      %p42 = scmp.ne.s32.totalorder %s28, %s29
      %p43 = scmp.eq.s32.totalorder %s21, 1
      %p44 = por %p42, %p43
      %p46 = scmp.ne.s32.totalorder %s29, %s45
      %p47 = scmp.eq.s32.totalorder %s21, 0
      %p48 = por %p46, %p47
      %s50 = sadd.s32 %s49, 1
      %p53 = scmp.eq.s32.totalorder %s15, 1
      %p54 = scmp.ne.s32.totalorder %s49, %s51
      %p55 = scmp.eq.s32.totalorder %s15, 0
      %p56 = por %p54, %p55
      %p57 = scmp.ne.s32.totalorder %s49, %s51
      %p58 = scmp.eq.s32.totalorder %s20, 1
      %p59 = por %p57, %p58
      %p60 = scmp.ne.s32.totalorder %s51, %s52
      %p61 = scmp.eq.s32.totalorder %s20, 0
      %p62 = por %p60, %p61
      %p63 = scmp.ne.s32.totalorder %s51, %s52
      %p64 = scmp.eq.s32.totalorder %s21, 1
      %p65 = por %p63, %p64
      %p67 = scmp.ne.s32.totalorder %s52, %s66
      %p68 = scmp.eq.s32.totalorder %s21, 0
      %p69 = por %p67, %p68
      %s71 = sadd.s32 %s70, 1
      %p74 = scmp.eq.s32.totalorder %s15, 1
      %p75 = scmp.ne.s32.totalorder %s70, %s72
      %p76 = scmp.eq.s32.totalorder %s15, 0
      %p77 = por %p75, %p76
      %p78 = scmp.ne.s32.totalorder %s70, %s72
      %p79 = scmp.eq.s32.totalorder %s20, 1
      %p80 = por %p78, %p79
      %p81 = scmp.ne.s32.totalorder %s72, %s73
      %p82 = scmp.eq.s32.totalorder %s20, 0
      %p83 = por %p81, %p82
      %p84 = scmp.ne.s32.totalorder %s72, %s73
      %p85 = scmp.eq.s32.totalorder %s21, 1
      %p86 = por %p84, %p85
      %p88 = scmp.ne.s32.totalorder %s73, %s87
      %p89 = scmp.eq.s32.totalorder %s21, 0
      %p90 = por %p88, %p89
      %s91 = ssub.s32 %s15, %s22
      %p92 = scmp.eq.s32.totalorder %s91, 0
      %s94 = sadd.s32 %s93, 1
      %s95 = scalar_select %p92, %s93, %s94
      %p98 = pneg %p92
      %p99 = scmp.eq.s32.totalorder %s15, 1
      %p100 = por %p98, %p99
      %p101 = scmp.ne.s32.totalorder %s93, %s96
      %p102 = scmp.eq.s32.totalorder %s15, 0
      %p103 = por %p101, %p102
      %p104 = scmp.ne.s32.totalorder %s93, %s96
      %p105 = scmp.eq.s32.totalorder %s20, 1
      %p106 = por %p104, %p105
      %p107 = scmp.ne.s32.totalorder %s96, %s97
      %p108 = scmp.eq.s32.totalorder %s20, 0
      %p109 = por %p107, %p108
      %p110 = scmp.ne.s32.totalorder %s96, %s97
      %p111 = scmp.eq.s32.totalorder %s21, 1
      %p112 = por %p110, %p111
      %p114 = scmp.ne.s32.totalorder %s97, %s113
      %p115 = scmp.eq.s32.totalorder %s21, 0
      %p116 = por %p114, %p115
      %p117 = scmp.le.s32.totalorder 1, %s15
      %p118 = scmp.lt.s32.totalorder %s15, 3
      %p119 = pnand %p117, %p118
      %p120 = pneg %p119
      // Predicated region
      $region9: #{tpu_custom_call.1} parent=5 // pred_check
        _
      $region10: #{tpu_custom_call.1} parent=5 // pred_check_branch
        %122 = sbr.rel (%p119) target = $region12
      $region11: #{tpu_custom_call.1} parent=5 // pred_region
        %s123 = ssub.s32 %s15, 1
        // Predicated region
        $region13: #{tpu_custom_call.1} parent=11 // pred_check
          %p124 = pneg %p62
        $region14: #{tpu_custom_call.1} parent=11 // pred_check_branch
          %126 = sbr.rel (%p124) target = $region16
        $region15: #{tpu_custom_call.1} parent=11 // pred_region
          _
        $region16: #{tpu_custom_call.1} parent=11 // pred_fallthru
          _
        // Predicated region
        $region17: #{tpu_custom_call.1} parent=11 // pred_check
          %p127 = pneg %p83
        $region18: #{tpu_custom_call.1} parent=11 // pred_check_branch
          %129 = sbr.rel (%p127) target = $region20
        $region19: #{tpu_custom_call.1} parent=11 // pred_region
          _
        $region20: #{tpu_custom_call.1} parent=11 // pred_fallthru
          _
      $region12: #{tpu_custom_call.1} parent=5 // pred_fallthru
        _
      %p130 = scmp.lt.s32.totalorder %s15, 2
      // Predicated region
      $region21: #{tpu_custom_call.1} parent=5 // pred_check
        %p131 = pneg %p130
      $region22: #{tpu_custom_call.1} parent=5 // pred_check_branch
        %133 = sbr.rel (%p131) target = $region24
      $region23: #{tpu_custom_call.1} parent=5 // pred_region
        // Predicated region
        $region25: #{tpu_custom_call.1} parent=23 // pred_check
          %p134 = pneg %p35
        $region26: #{tpu_custom_call.1} parent=23 // pred_check_branch
          %136 = sbr.rel (%p134) target = $region28
        $region27: #{tpu_custom_call.1} parent=23 // pred_region
          %s137 = sand.u32 %s25, 1
          %s138 = scalar_lea.sflag [#allocation5], %s137
          %s139 = sand.u32 %s25, 1
          %s140 = smul.addr %s139, 8
          %s141 = scalar_lea.vmem [#allocation4], %s140
          %143 = vsyncadd %s138, 0
          %s144 = smul.addr %s15, 2
          %s145 = smul.addr %s144, 4
          %s146 = scalar_lea.hbm %s0, %s145
          %s148 = sshll.u32 %s146, 4
          %s149 = int_to_ptr.hbm [resolvable:$true] %s148
          %s150 = sshll.u32 %s141, 4
          %s151 = int_to_ptr.vmem [resolvable:$true] %s150
          %153 = dma.hbm_to_vmem [thread:$0]  %s149, 128, %s151, %s138
        $region28: #{tpu_custom_call.1} parent=23 // pred_fallthru
          _
      $region24: #{tpu_custom_call.1} parent=5 // pred_fallthru
        _
      %p154 = scmp.le.s32.totalorder 1, %s15
      %p155 = scmp.lt.s32.totalorder %s15, 3
      %p156 = pnand %p154, %p155
      %p157 = pneg %p156
      // Predicated region
      $region29: #{tpu_custom_call.1} parent=5 // pred_check
        _
      $region30: #{tpu_custom_call.1} parent=5 // pred_check_branch
        %159 = sbr.rel (%p156) target = $region32
      $region31: #{tpu_custom_call.1} parent=5 // pred_region
        %s160 = ssub.s32 %s15, 1
        %s161 = sand.u32 %s28, 1
        %s162 = scalar_lea.sflag [#allocation5], %s161
        %s163 = sand.u32 %s28, 1
        %s164 = smul.addr %s163, 8
        %s165 = scalar_lea.vmem [#allocation4], %s164
        // Predicated region
        $region33: #{tpu_custom_call.1} parent=31 // pred_check
          %p166 = pneg %p41
        $region34: #{tpu_custom_call.1} parent=31 // pred_check_branch
          %168 = sbr.rel (%p166) target = $region36
        $region35: #{tpu_custom_call.1} parent=31 // pred_region
          %170 = dma.done %s162, 128
        $region36: #{tpu_custom_call.1} parent=31 // pred_fallthru
          _
        %s171 = sand.u32 %s28, 1
        %s172 = scalar_lea.sflag [#allocation5], %s171
        %s173 = sand.u32 %s28, 1
        %s174 = smul.addr %s173, 8
        %s175 = scalar_lea.vmem [#allocation4], %s174
        %p176 = pneg %p41
        %p177 = pneg %p38
        %p178 = pneg %p62
        %p179 = pneg %p59
        %p180 = pneg %p83
        %p181 = pneg %p80
        %p182 = pneg %p109
        %p183 = pneg %p106
        %s184 = sand.u32 %s96, 1
        %s185 = scalar_lea.sflag [#allocation6], %s184
        %s186 = sand.u32 %s96, 1
        %s187 = smul.addr %s186, 16
        %s188 = scalar_lea.vmem [#allocation7], %s187
        %189 = vst [vmem:[#allocation2] sm:$0xff] 0.0
        %190 = vst [vmem:[#allocation2 + $0x8] sm:$0xff] 0.0
        %v191 = vld [vmem:[%s165] sm:$0xff]
        %192 = vst [vmem:[#allocation2 + $0x4] sm:$0xff] %v191
        %v193 = vlaneseq
        %v194 = vand.u32 %v193, 127
        %v195 = vadd.s32 %v194, 128
        %vm196 = vcmp.lt.s32.totalorder %v194, 0
        %v197 = vsub.s32 0, %v194
        %v198 = vsel %vm196, %v197, %v194
        %v199 = vshrl.u32 %v198, 4
        %v200 = vand.u32 %v198, 15
        %v201 = vsub.s32 0, %v200
        %v202 = vsel %vm196, %v201, %v200
        %vm203 = vcmp.lt.s32.totalorder %v195, 0
        %v204 = vsub.s32 0, %v195
        %v205 = vsel %vm203, %v204, %v195
        %v206 = vshrl.u32 %v205, 4
        %v207 = vand.u32 %v205, 15
        %v208 = vsub.s32 0, %v207
        %v209 = vsel %vm203, %v208, %v207
        %vm210 = vcmp.ne.s32.totalorder %v202, 0
        %vm211 = vcmp.ne.s32.totalorder %v209, 0
        %vm212 = vcmp.lt.s32.totalorder %v202, 0
        %vm213 = vcmp.lt.s32.totalorder %v209, 0
        %vm214 = vmand %vm212, %vm210
        %vm215 = vmand %vm213, %vm211
        %v216 = vadd.s32 %v202, 16
        %v217 = vadd.s32 %v209, 16
        %v218 = vsel %vm214, %v216, %v202
        %v219 = vsel %vm215, %v217, %v209
        %v220 = vadd.s32 %v218, 4294967295
        %v221 = vadd.s32 %v219, 4294967295
        %vm222 = vcmp.ge.s32.totalorder %v220, 0
        %vm223 = vcmp.ge.s32.totalorder %v221, 0
        %v224 = vadd.s32 %v218, 1
        %v225 = vadd.s32 %v219, 1
        %vm226 = vcmp.le.s32.totalorder %v224, 15
        %vm227 = vcmp.le.s32.totalorder %v225, 15
        %v228 = vld [vmem:[#allocation2] sm:$0xff]
        %v229 = vld [vmem:[#allocation2 + $0x8] sm:$0xf]
        %v230 = vsel %vm222, 1, 0
        %v231 = vsel %vm223, 1, 0
        %vm232 = vcmp.eq.s32.totalorder %v230, 1
        %vm233 = vcmp.eq.s32.totalorder %v231, 1
        %236 = vst [vmem:[#allocation1] ss:$2 sm:$0xff] %v228
        %s237 = scalar_lea.vmem [#allocation1], 16
        %238 = vst [vmem:[%s237] ss:$2 sm:$0xff] %v229
        %v239 = vld.sshfl [vmem:[#allocation1] sm:$0xff pattern:$0x75316420]
        %v240 = vld.sshfl [vmem:[#allocation1 + $0x8] sm:$0xff pattern:$0x75316420]
        %v241 = vld.sshfl [vmem:[#allocation1 + $0x10] sm:$0xff pattern:$0x75316420]
        %242 = vrot.lane.b32.xlu0 %v239, 17
        %v243 = vpop.permute.xlu0 %242
        %244 = vrot.lane.b32.xlu0 %v240, 17
        %v245 = vpop.permute.xlu0 %244
        %246 = vrot.lane.b32.xlu0 %v241, 17
        %v247 = vpop.permute.xlu0 %246
        %vm248 = vcmask 138240
        %v249 = vsel %vm248, %v243, %v245
        %v250 = vsel %vm248, %v245, %v247
        %v253 = vsel %vm232, %v249, 0.0
        %v254 = vsel %vm233, %v250, 0.0
        %255 = vst [vmem:[#allocation3] sm:$0xf] %v253
        %256 = vst [vmem:[#allocation3 + $0x8] sm:$0xf] %v254
        %v257 = vld [vmem:[#allocation2] sm:$0xff]
        %v258 = vld [vmem:[#allocation2 + $0x8] sm:$0xf]
        %s261 = scalar_lea.vmem [#allocation1], 1
        %262 = vst [vmem:[%s261] ss:$2 sm:$0xff] %v257
        %s263 = scalar_lea.vmem [#allocation1], 17
        %264 = vst [vmem:[%s263] ss:$2 sm:$0xff] %v258
        %v265 = vld.sshfl [vmem:[#allocation1] sm:$0xff pattern:$0x75316420]
        %v266 = vld.sshfl [vmem:[#allocation1 + $0x8] sm:$0xff pattern:$0x75316420]
        %v267 = vld.sshfl [vmem:[#allocation1 + $0x10] sm:$0xff pattern:$0x75316420]
        %268 = vrot.lane.b32.xlu0 %v265, 16
        %v269 = vpop.permute.xlu0 %268
        %270 = vrot.lane.b32.xlu0 %v266, 16
        %v271 = vpop.permute.xlu0 %270
        %272 = vrot.lane.b32.xlu0 %v267, 16
        %v273 = vpop.permute.xlu0 %272
        %vm274 = vcmask 130048
        %v275 = vsel %vm274, %v269, %v271
        %v276 = vsel %vm274, %v271, %v273
        %279 = vst [vmem:[#allocation3] sm:$0xf0] %v275
        %280 = vst [vmem:[#allocation3 + $0x8] sm:$0xf0] %v276
        %v281 = vld [vmem:[#allocation2] sm:$0xff]
        %v282 = vld [vmem:[#allocation2 + $0x8] sm:$0xf]
        %v283 = vsel %vm226, 1, 0
        %v284 = vsel %vm227, 1, 0
        %vm285 = vcmp.eq.s32.totalorder %v283, 1
        %vm286 = vcmp.eq.s32.totalorder %v284, 1
        %289 = vst [vmem:[#allocation1] ss:$2 sm:$0xff] %v281
        %s290 = scalar_lea.vmem [#allocation1], 16
        %291 = vst [vmem:[%s290] ss:$2 sm:$0xff] %v282
        %v292 = vld.sshfl [vmem:[#allocation1] sm:$0xff pattern:$0x75316420]
        %v293 = vld.sshfl [vmem:[#allocation1 + $0x8] sm:$0xff pattern:$0x75316420]
        %v294 = vld.sshfl [vmem:[#allocation1 + $0x10] sm:$0xff pattern:$0x75316420]
        %295 = vrot.lane.b32.xlu0 %v292, 15
        %v296 = vpop.permute.xlu0 %295
        %297 = vrot.lane.b32.xlu0 %v293, 15
        %v298 = vpop.permute.xlu0 %297
        %299 = vrot.lane.b32.xlu0 %v294, 15
        %v300 = vpop.permute.xlu0 %299
        %vm301 = vcmask 121856
        %v302 = vsel %vm301, %v296, %v298
        %v303 = vsel %vm301, %v298, %v300
        %v306 = vsel %vm285, %v302, 0.0
        %v307 = vsel %vm286, %v303, 0.0
        %308 = vst [vmem:[#allocation3 + $0x10] sm:$0xf] %v306
        %309 = vst [vmem:[#allocation3 + $0x18] sm:$0xf] %v307
        %v310 = vld [vmem:[#allocation2] sm:$0xff]
        %v311 = vld [vmem:[#allocation2 + $0x8] sm:$0xf]
        %314 = vst [vmem:[#allocation1] ss:$2 sm:$0xff] %v310
        %s315 = scalar_lea.vmem [#allocation1], 16
        %316 = vst [vmem:[%s315] ss:$2 sm:$0xff] %v311
        %v317 = vld.sshfl [vmem:[#allocation1] sm:$0xff pattern:$0x75316420]
        %v318 = vld.sshfl [vmem:[#allocation1 + $0x8] sm:$0xff pattern:$0x75316420]
        %v319 = vld.sshfl [vmem:[#allocation1 + $0x10] sm:$0xff pattern:$0x75316420]
        %320 = vrot.lane.b32.xlu0 %v317, 1
        %v321 = vpop.permute.xlu0 %320
        %322 = vrot.lane.b32.xlu0 %v318, 1
        %v323 = vpop.permute.xlu0 %322
        %324 = vrot.lane.b32.xlu0 %v319, 1
        %v325 = vpop.permute.xlu0 %324
        %vm326 = vcmask 7168
        %v327 = vsel %vm326, %v321, %v323
        %v328 = vsel %vm326, %v323, %v325
        %v331 = vsel %vm232, %v327, 0.0
        %v332 = vsel %vm233, %v328, 0.0
        %v335 = vrot.slane %v331, 4
        %v336 = vrot.slane %v332, 4
        %339 = vst [vmem:[#allocation3 + $0x10] sm:$0xf0] %v335
        %340 = vst [vmem:[#allocation3 + $0x18] sm:$0xf0] %v336
        %v341 = vld [vmem:[#allocation2 + $0x4] sm:$0xff]
        %343 = vst [vmem:[#allocation1] ss:$2 sm:$0xff] %v341
        %v344 = vld.sshfl [vmem:[#allocation1] sm:$0xff pattern:$0x75316420]
        %v345 = vld.sshfl [vmem:[#allocation1 + $0x8] sm:$0xff pattern:$0x75316420]
        %348 = vst [vmem:[#allocation3 + $0x20] sm:$0xf] %v344
        %349 = vst [vmem:[#allocation3 + $0x28] sm:$0xf] %v345
        %v350 = vld [vmem:[#allocation2 + $0x4] sm:$0xff]
        %v351 = vld [vmem:[#allocation2 + $0xc] sm:$0xf]
        %354 = vst [vmem:[#allocation1] ss:$2 sm:$0xff] %v350
        %s355 = scalar_lea.vmem [#allocation1], 16
        %356 = vst [vmem:[%s355] ss:$2 sm:$0xff] %v351
        %v357 = vld.sshfl [vmem:[#allocation1] sm:$0xff pattern:$0x75316420]
        %v358 = vld.sshfl [vmem:[#allocation1 + $0x8] sm:$0xff pattern:$0x75316420]
        %v359 = vld.sshfl [vmem:[#allocation1 + $0x10] sm:$0xff pattern:$0x75316420]
        %360 = vrot.lane.b32.xlu0 %v357, 127
        %v361 = vpop.permute.xlu0 %360
        %362 = vrot.lane.b32.xlu0 %v358, 127
        %v363 = vpop.permute.xlu0 %362
        %364 = vrot.lane.b32.xlu0 %v359, 127
        %v365 = vpop.permute.xlu0 %364
        %vm366 = vcmask 1039360
        %v367 = vsel %vm366, %v361, %v363
        %v368 = vsel %vm366, %v363, %v365
        %v371 = vsel %vm285, %v367, 0.0
        %v372 = vsel %vm286, %v368, 0.0
        %v375 = vrot.slane %v371, 4
        %v376 = vrot.slane %v372, 4
        %379 = vst [vmem:[#allocation3 + $0x20] sm:$0xf0] %v375
        %380 = vst [vmem:[#allocation3 + $0x28] sm:$0xf0] %v376
        %v381 = vld [vmem:[#allocation2 + $0x4] sm:$0xff]
        %v382 = vld [vmem:[#allocation2 + $0xc] sm:$0xf]
        %385 = vst [vmem:[#allocation1] ss:$2 sm:$0xff] %v381
        %s386 = scalar_lea.vmem [#allocation1], 16
        %387 = vst [vmem:[%s386] ss:$2 sm:$0xff] %v382
        %v388 = vld.sshfl [vmem:[#allocation1] sm:$0xff pattern:$0x75316420]
        %v389 = vld.sshfl [vmem:[#allocation1 + $0x8] sm:$0xff pattern:$0x75316420]
        %v390 = vld.sshfl [vmem:[#allocation1 + $0x10] sm:$0xff pattern:$0x75316420]
        %391 = vrot.lane.b32.xlu0 %v388, 113
        %v392 = vpop.permute.xlu0 %391
        %393 = vrot.lane.b32.xlu0 %v389, 113
        %v394 = vpop.permute.xlu0 %393
        %395 = vrot.lane.b32.xlu0 %v390, 113
        %v396 = vpop.permute.xlu0 %395
        %vm397 = vcmask 924672
        %v398 = vsel %vm397, %v392, %v394
        %v399 = vsel %vm397, %v394, %v396
        %v402 = vsel %vm232, %v398, 0.0
        %v403 = vsel %vm233, %v399, 0.0
        %404 = vst [vmem:[#allocation3 + $0x30] sm:$0xf] %v402
        %405 = vst [vmem:[#allocation3 + $0x38] sm:$0xf] %v403
        %v406 = vld [vmem:[#allocation2 + $0x4] sm:$0xff]
        %v407 = vld [vmem:[#allocation2 + $0xc] sm:$0xf]
        %s410 = scalar_lea.vmem [#allocation1], 1
        %411 = vst [vmem:[%s410] ss:$2 sm:$0xff] %v406
        %s412 = scalar_lea.vmem [#allocation1], 17
        %413 = vst [vmem:[%s412] ss:$2 sm:$0xff] %v407
        %v414 = vld.sshfl [vmem:[#allocation1] sm:$0xff pattern:$0x75316420]
        %v415 = vld.sshfl [vmem:[#allocation1 + $0x8] sm:$0xff pattern:$0x75316420]
        %v416 = vld.sshfl [vmem:[#allocation1 + $0x10] sm:$0xff pattern:$0x75316420]
        %417 = vrot.lane.b32.xlu0 %v414, 112
        %v418 = vpop.permute.xlu0 %417
        %419 = vrot.lane.b32.xlu0 %v415, 112
        %v420 = vpop.permute.xlu0 %419
        %421 = vrot.lane.b32.xlu0 %v416, 112
        %v422 = vpop.permute.xlu0 %421
        %vm423 = vcmask 916480
        %v424 = vsel %vm423, %v418, %v420
        %v425 = vsel %vm423, %v420, %v422
        %428 = vst [vmem:[#allocation3 + $0x30] sm:$0xf0] %v424
        %429 = vst [vmem:[#allocation3 + $0x38] sm:$0xf0] %v425
        %v430 = vld [vmem:[#allocation2 + $0x4] sm:$0xff]
        %v431 = vld [vmem:[#allocation2 + $0xc] sm:$0xf]
        %434 = vst [vmem:[#allocation1] ss:$2 sm:$0xff] %v430
        %s435 = scalar_lea.vmem [#allocation1], 16
        %436 = vst [vmem:[%s435] ss:$2 sm:$0xff] %v431
        %v437 = vld.sshfl [vmem:[#allocation1] sm:$0xff pattern:$0x75316420]
        %v438 = vld.sshfl [vmem:[#allocation1 + $0x8] sm:$0xff pattern:$0x75316420]
        %v439 = vld.sshfl [vmem:[#allocation1 + $0x10] sm:$0xff pattern:$0x75316420]
        %440 = vrot.lane.b32.xlu0 %v437, 111
        %v441 = vpop.permute.xlu0 %440
        %442 = vrot.lane.b32.xlu0 %v438, 111
        %v443 = vpop.permute.xlu0 %442
        %444 = vrot.lane.b32.xlu0 %v439, 111
        %v445 = vpop.permute.xlu0 %444
        %vm446 = vcmask 908288
        %v447 = vsel %vm446, %v441, %v443
        %v448 = vsel %vm446, %v443, %v445
        %v451 = vsel %vm285, %v447, 0.0
        %v452 = vsel %vm286, %v448, 0.0
        %453 = vst [vmem:[#allocation3 + $0x40] sm:$0xf] %v451
        %454 = vst [vmem:[#allocation3 + $0x48] sm:$0xf] %v452
        %v455 = vld [vmem:[%s1] sm:$0xff]
        %v456 = vld [vmem:[#allocation3] sm:$0xff]
        %v457 = vld [vmem:[#allocation3 + $0x8] sm:$0xff]
        %v458 = vld [vmem:[#allocation3 + $0x10] sm:$0xff]
        %v459 = vld [vmem:[#allocation3 + $0x18] sm:$0xff]
        %v460 = vld [vmem:[#allocation3 + $0x20] sm:$0xff]
        %v461 = vld [vmem:[#allocation3 + $0x28] sm:$0xff]
        %v462 = vld [vmem:[#allocation3 + $0x30] sm:$0xff]
        %v463 = vld [vmem:[#allocation3 + $0x38] sm:$0xff]
        %v464 = vld [vmem:[#allocation3 + $0x40] sm:$0xf]
        %v465 = vld [vmem:[#allocation3 + $0x48] sm:$0xf]
        %v466 = vld [vmem:[%s2] sm:$0xff]
        %468 = vset.pattern.permute.xlu0 0
        %469 = vperm.xlu0 %468, %v466
        %v470 = vpop.permute.xlu0 %469
        %vm472 = vcmask 293888
        %v474 = vsel %vm472, %v455, 0
        %vm476 = vcmask 1043456
        %v478 = vsel %vm476, %v464, 0
        %v481 = vsel %vm476, %v465, 0
        %483 = vmatpush.msra.mxu0 0.0
        %484 = vmatpush.msra.mxu0 0.0
        %485 = vmatpush.msra.mxu0 0.0
        %486 = vmatpush.msra.mxu0 0.0
        %487 = vmatpush.msra.mxu0 0.0
        %488 = vmatpush.msra.mxu0 0.0
        %489 = vmatpush.msra.mxu0 0.0
        %490 = vmatpush.msra.mxu0 0.0
        %491 = vmatpush.msra.mxu0 0.0
        %492 = vmatpush.msra.mxu0 0.0
        %493 = vmatpush.msra.mxu0 0.0
        %494 = vmatpush.msra.mxu0 %v478
        %495 = vmatpush.msra.mxu0 %v462
        %496 = vmatpush.msra.mxu0 %v460
        %497 = vmatpush.msra.mxu0 %v458
        %498 = vmatpush.msra.mxu0 %v456
        %499 = vmatmul.f32.gmra.mxu0 %v474
        %v500 = vpop.f32.mrf.mxu0
        %v501 = vadd.f32 %v470, %v500
        %502 = vdwg.mxu0
        %503 = vmatpush.msra.mxu0 0.0
        %504 = vmatpush.msra.mxu0 0.0
        %505 = vmatpush.msra.mxu0 0.0
        %506 = vmatpush.msra.mxu0 0.0
        %507 = vmatpush.msra.mxu0 0.0
        %508 = vmatpush.msra.mxu0 0.0
        %509 = vmatpush.msra.mxu0 0.0
        %510 = vmatpush.msra.mxu0 0.0
        %511 = vmatpush.msra.mxu0 0.0
        %512 = vmatpush.msra.mxu0 0.0
        %513 = vmatpush.msra.mxu0 0.0
        %514 = vmatpush.msra.mxu0 %v481
        %515 = vmatpush.msra.mxu0 %v463
        %516 = vmatpush.msra.mxu0 %v461
        %517 = vmatpush.msra.mxu0 %v459
        %518 = vmatpush.msra.mxu0 %v457
        %519 = vmatmul.f32.gmra.mxu0 %v474
        %v520 = vpop.f32.mrf.mxu0
        %v521 = vadd.f32 %v470, %v520
        %522 = vdwg.mxu0
        %523 = vst [vmem:[%s188] sm:$0xff] %v501
        %524 = vst [vmem:[%s188 + $0x8] sm:$0xff] %v521
        %s525 = sand.u32 %s96, 1
        %s526 = scalar_lea.sflag [#allocation6], %s525
        %s527 = sand.u32 %s96, 1
        %s528 = smul.addr %s527, 16
        %s529 = scalar_lea.vmem [#allocation7], %s528
        // Predicated region
        $region37: #{tpu_custom_call.1} parent=31 // pred_check
          %p530 = pneg %p106
        $region38: #{tpu_custom_call.1} parent=31 // pred_check_branch
          %532 = sbr.rel (%p530) target = $region40
        $region39: #{tpu_custom_call.1} parent=31 // pred_region
          %534 = vsyncadd %s526, 0
          %s535 = smul.addr %s20, 2
          %s536 = smul.addr %s535, 8
          %s537 = scalar_lea.hbm %s3, %s536
          %s539 = sshll.u32 %s529, 4
          %s540 = int_to_ptr.vmem [resolvable:$true] %s539
          %s541 = sshll.u32 %s537, 4
          %s542 = int_to_ptr.hbm [resolvable:$true] %s541
          %544 = dma.vmem_to_hbm [thread:$0]  %s540, 256, %s542, %s526
        $region40: #{tpu_custom_call.1} parent=31 // pred_fallthru
          _
      $region32: #{tpu_custom_call.1} parent=5 // pred_fallthru
        _
      %p545 = scmp.le.s32.totalorder 2, %s15
      // Predicated region
      $region41: #{tpu_custom_call.1} parent=5 // pred_check
        %p546 = pneg %p545
      $region42: #{tpu_custom_call.1} parent=5 // pred_check_branch
        %548 = sbr.rel (%p546) target = $region44
      $region43: #{tpu_custom_call.1} parent=5 // pred_region
        %s549 = ssub.s32 %s15, 2
        // Predicated region
        $region45: #{tpu_custom_call.1} parent=43 // pred_check
          %p550 = pneg %p112
        $region46: #{tpu_custom_call.1} parent=43 // pred_check_branch
          %552 = sbr.rel (%p550) target = $region48
        $region47: #{tpu_custom_call.1} parent=43 // pred_region
          %s553 = sand.u32 %s97, 1
          %s554 = scalar_lea.sflag [#allocation6], %s553
          %s555 = sand.u32 %s97, 1
          %s556 = smul.addr %s555, 16
          %s557 = scalar_lea.vmem [#allocation7], %s556
          %559 = dma.done %s554, 256
        $region48: #{tpu_custom_call.1} parent=43 // pred_fallthru
          _
      $region44: #{tpu_custom_call.1} parent=5 // pred_fallthru
        _
    $region6: #{tpu_custom_call.1} parent=1 // loop_footer
      %s19 = sadd.s32 1, %s15
    $region7: #{tpu_custom_call.1} parent=1 // loop_footer_branch
      %14 = sbr.rel target = $region3
    $region8: #{tpu_custom_call.1} parent=1 // loop_exit
      _
    %560 = vsyncpa [#allocation5], 1
    %s561 = scalar_lea.sflag [#allocation5], 1
    %562 = vsyncpa %s561, 1
    %563 = vsyncpa [#allocation6], 1
    %s564 = scalar_lea.sflag [#allocation6], 1
    %565 = vsyncpa %s564, 1

</llo_original>
